<compile_context>
chip_gen: v5e
topology: v5e:2x2
jax: 0.10.0
libtpu: 0.0.40
codegen_flags: <defaults>
</compile_context>

<pallas_src>
import functools

import jax
import jax.numpy as jnp
from jax.experimental import pallas as pl
from jax.experimental.pallas import tpu as pltpu

IN_FEATURES = 64
HIDDEN = 32
OUT_FEATURES = 4
HIDDEN_PAD = 128   # lane-dense hidden/contraction dim (VMEM/MXU only, never HBM)


def _round_up(n: int, m: int) -> int:
    return ((n + m - 1) // m) * m


def mlp_kernel(x_ref, w1_ref, b1_ref, w2_ref, b2_ref, o_ref):
    # fc1: (tb, 64) @ (64, 128) + (1, 128) -> ReLU.
    # Padded hidden columns are exact zeros (zero weights, zero bias -> relu(0)=0).
    h = jnp.dot(x_ref[...], w1_ref[...], preferred_element_type=jnp.float32)
    h = jnp.maximum(h + b1_ref[...], 0.0)
    # fc2: (tb, 128) @ (128, 128); padded rows/cols of w2 are zeros.
    o = jnp.dot(h, w2_ref[...], preferred_element_type=jnp.float32)
    # Store only the 4 real output columns: HBM writeback stays narrow.
    o_ref[...] = (o[:, :OUT_FEATURES] + b2_ref[...]).astype(o_ref.dtype)


def prepare_params(w1, b1, w2, b2):
    """Zero-pad parameters to lane-dense shapes once, outside the hot path."""
    w1 = jnp.asarray(w1, jnp.float32)
    b1 = jnp.reshape(jnp.asarray(b1, jnp.float32), (1, HIDDEN))
    w2 = jnp.asarray(w2, jnp.float32)
    b2 = jnp.reshape(jnp.asarray(b2, jnp.float32), (1, OUT_FEATURES))
    w1_p = jnp.zeros((IN_FEATURES, HIDDEN_PAD), jnp.float32).at[:, :HIDDEN].set(w1)
    b1_p = jnp.zeros((1, HIDDEN_PAD), jnp.float32).at[:, :HIDDEN].set(b1)
    w2_p = jnp.zeros((HIDDEN_PAD, HIDDEN_PAD), jnp.float32).at[:HIDDEN, :OUT_FEATURES].set(w2)
    b2_p = b2  # kept narrow (1, 4); added after the slice inside the kernel
    return w1_p, b1_p, w2_p, b2_p


@functools.partial(jax.jit, static_argnames=("block_b",))
def net_forward(x, w1_p, b1_p, w2_p, b2_p, *, block_b: int = 4096):
    """Forward pass of Net: relu(x @ w1 + b1) @ w2 + b2 -> (B, 4) float32."""
    B = x.shape[0]
    x = x.astype(jnp.float32)

    # Batch tile: multiple of 8 (sublane rule), capped by block_b; prefer >= 2
    # grid steps so dimension_semantics=("parallel",) shards across v7x's 2 TCs.
    tb = _round_up(min(block_b, B), 8)
    if B >= 16 and pl.cdiv(B, tb) < 2:
        tb = _round_up(pl.cdiv(B, 2), 8)
    grid = (pl.cdiv(B, tb),)  # ragged last block: reads OOB garbage rows, writes masked

    return pl.pallas_call(
        mlp_kernel,
        out_shape=jax.ShapeDtypeStruct((B, OUT_FEATURES), jnp.float32),
        grid_spec=pltpu.PrefetchScalarGridSpec(
            num_scalar_prefetch=0,
            grid=grid,
            in_specs=[
                # x: tiled along batch, double-buffered by the pipeline.
                pl.BlockSpec((tb, IN_FEATURES), lambda i: (i, 0)),
                # Weights / biases: same block every step -> VMEM-resident.
                pl.BlockSpec((IN_FEATURES, HIDDEN_PAD), lambda i: (0, 0)),
                pl.BlockSpec((1, HIDDEN_PAD), lambda i: (0, 0)),
                pl.BlockSpec((HIDDEN_PAD, HIDDEN_PAD), lambda i: (0, 0)),
                pl.BlockSpec((1, OUT_FEATURES), lambda i: (0, 0)),
            ],
            # Narrow, full-last-dim output block: contiguous HBM writeback of 4 cols.
            out_specs=pl.BlockSpec((tb, OUT_FEATURES), lambda i: (i, 0)),
        ),
        compiler_params=pltpu.CompilerParams(
            dimension_semantics=("parallel",),
            vmem_limit_bytes=32 * 1024 * 1024,  # safe on v7x's 64 MiB physical VMEM
        ),
    )(x, w1_p, b1_p, w2_p, b2_p)


def init_params(key):
    # Mirror nn.Linear's U(-1/sqrt(fan_in), 1/sqrt(fan_in)) init.
    k1, k2, k3, k4 = jax.random.split(key, 4)
    lim1 = 1.0 / jnp.sqrt(float(IN_FEATURES))
    lim2 = 1.0 / jnp.sqrt(float(HIDDEN))
    w1 = jax.random.uniform(k1, (IN_FEATURES, HIDDEN), jnp.float32, -lim1, lim1)
    b1 = jax.random.uniform(k2, (HIDDEN,), jnp.float32, -lim1, lim1)
    w2 = jax.random.uniform(k3, (HIDDEN, OUT_FEATURES), jnp.float32, -lim2, lim2)
    b2 = jax.random.uniform(k4, (OUT_FEATURES,), jnp.float32, -lim2, lim2)
    return w1, b1, w2, b2


if __name__ == "__main__":
    key = jax.random.PRNGKey(0)
    kx, kp = jax.random.split(key)
    B = 8
    x = jax.random.normal(kx, (B, IN_FEATURES), jnp.float32)
    w1, b1, w2, b2 = init_params(kp)
    params = prepare_params(w1, b1, w2, b2)

    out = jax.block_until_ready(net_forward(x, *params))
    ref = jnp.maximum(x @ w1 + b1[None, :], 0.0) @ w2 + b2[None, :]
    assert out.shape == (B, OUT_FEATURES)
    assert jnp.allclose(out, ref, atol=1e-5, rtol=1e-5)

    # Ragged batch (B not a multiple of the tile): exercises partial last block
    # and the >=2-grid-step (megacore) path without any jnp.pad copy of x.
    B2 = 300
    x2 = jax.random.normal(jax.random.PRNGKey(3), (B2, IN_FEATURES), jnp.float32)
    out2 = jax.block_until_ready(net_forward(x2, *params))
    ref2 = jnp.maximum(x2 @ w1 + b1[None, :], 0.0) @ w2 + b2[None, :]
    assert out2.shape == (B2, OUT_FEATURES)
    assert jnp.allclose(out2, ref2, atol=1e-5, rtol=1e-5)

    print("KERNEL_OK")
</pallas_src>

<mosaic_0001>
module attributes {stable_mosaic.version = 11 : i64} {
  func.func @mlp_kernel(%arg0: i32, %arg1: memref<8x64xf32, #tpu.memory_space<vmem>>, %arg2: memref<64x128xf32, #tpu.memory_space<vmem>>, %arg3: memref<1x128xf32, #tpu.memory_space<vmem>>, %arg4: memref<128x128xf32, #tpu.memory_space<vmem>>, %arg5: memref<1x4xf32, #tpu.memory_space<vmem>>, %arg6: memref<8x4xf32, #tpu.memory_space<vmem>>) attributes {dimension_semantics = [#tpu.dimension_semantics<parallel>], iteration_bounds = array<i64: 1>, scalar_prefetch = 0 : i64, scratch_operands = 0 : i64, tpu.core_type = #tpu.core_type<tc>, window_params = [{transform_indices = @transform_0, window_bounds = array<i64: 8, 64>}, {pipeline_mode = #tpu.pipeline_mode<synchronous>, transform_indices = @transform_1, window_bounds = array<i64: 64, 128>}, {pipeline_mode = #tpu.pipeline_mode<synchronous>, transform_indices = @transform_2, window_bounds = array<i64: 1, 128>}, {pipeline_mode = #tpu.pipeline_mode<synchronous>, transform_indices = @transform_3, window_bounds = array<i64: 128, 128>}, {pipeline_mode = #tpu.pipeline_mode<synchronous>, transform_indices = @transform_4, window_bounds = array<i64: 1, 4>}, {transform_indices = @transform_5, window_bounds = array<i64: 8, 4>}]} {
    %c0 = arith.constant 0 : index
    %c0_0 = arith.constant 0 : index
    %0 = vector.load %arg1[%c0, %c0_0] : memref<8x64xf32, #tpu.memory_space<vmem>>, vector<8x64xf32>
    %c0_1 = arith.constant 0 : index
    %c0_2 = arith.constant 0 : index
    %1 = vector.load %arg2[%c0_1, %c0_2] : memref<64x128xf32, #tpu.memory_space<vmem>>, vector<64x128xf32>
    %cst = arith.constant dense<0.000000e+00> : vector<8x128xf32>
    %2 = tpu.matmul %0, %1, %cst {dimension_numbers = #tpu.dot_dimension_numbers<[1], [0], [0], [1], [0, 0, 1, 1], [], []>} : vector<8x64xf32>, vector<64x128xf32>, vector<8x128xf32> -> vector<8x128xf32>
    %c0_3 = arith.constant 0 : index
    %c0_4 = arith.constant 0 : index
    %3 = vector.load %arg3[%c0_3, %c0_4] : memref<1x128xf32, #tpu.memory_space<vmem>>, vector<1x128xf32>
    %4 = vector.broadcast %3 : vector<1x128xf32> to vector<8x128xf32>
    %5 = arith.addf %2, %4 : vector<8x128xf32>
    %cst_5 = arith.constant 0.000000e+00 : f32
    %6 = vector.broadcast %cst_5 : f32 to vector<8x128xf32>
    %7 = arith.maximumf %5, %6 : vector<8x128xf32>
    %c0_6 = arith.constant 0 : index
    %c0_7 = arith.constant 0 : index
    %8 = vector.load %arg4[%c0_6, %c0_7] : memref<128x128xf32, #tpu.memory_space<vmem>>, vector<128x128xf32>
    %cst_8 = arith.constant dense<0.000000e+00> : vector<8x128xf32>
    %9 = tpu.matmul %7, %8, %cst_8 {dimension_numbers = #tpu.dot_dimension_numbers<[1], [0], [0], [1], [0, 0, 1, 1], [], []>} : vector<8x128xf32>, vector<128x128xf32>, vector<8x128xf32> -> vector<8x128xf32>
    %10 = vector.extract_strided_slice %9 {offsets = [0, 0], sizes = [8, 4], strides = [1, 1]} : vector<8x128xf32> to vector<8x4xf32>
    %c0_9 = arith.constant 0 : index
    %c0_10 = arith.constant 0 : index
    %11 = vector.load %arg5[%c0_9, %c0_10] : memref<1x4xf32, #tpu.memory_space<vmem>>, vector<1x4xf32>
    %12 = vector.broadcast %11 : vector<1x4xf32> to vector<8x4xf32>
    %13 = arith.addf %10, %12 : vector<8x4xf32>
    %c0_11 = arith.constant 0 : index
    %c0_12 = arith.constant 0 : index
    %14 = vector.load %arg6[%c0_11, %c0_12] : memref<8x4xf32, #tpu.memory_space<vmem>>, vector<8x4xf32>
    tpu.vector_store %arg6[%c0_11, %c0_12], %13 {strides = array<i32>} : memref<8x4xf32, #tpu.memory_space<vmem>>, vector<8x4xf32>,
    return
  }
  func.func @transform_0(%arg0: i32) -> (i32, i32) {
    %c0_i32 = arith.constant 0 : i32
    %c0_i32_0 = arith.constant 0 : i32
    return %arg0, %c0_i32 : i32, i32
  }
  func.func @transform_1(%arg0: i32) -> (i32, i32) {
    %c0_i32 = arith.constant 0 : i32
    %c0_i32_0 = arith.constant 0 : i32
    %c0_i32_1 = arith.constant 0 : i32
    return %c0_i32, %c0_i32_0 : i32, i32
  }
  func.func @transform_2(%arg0: i32) -> (i32, i32) {
    %c0_i32 = arith.constant 0 : i32
    %c0_i32_0 = arith.constant 0 : i32
    %c0_i32_1 = arith.constant 0 : i32
    return %c0_i32, %c0_i32_0 : i32, i32
  }
  func.func @transform_3(%arg0: i32) -> (i32, i32) {
    %c0_i32 = arith.constant 0 : i32
    %c0_i32_0 = arith.constant 0 : i32
    %c0_i32_1 = arith.constant 0 : i32
    return %c0_i32, %c0_i32_0 : i32, i32
  }
  func.func @transform_4(%arg0: i32) -> (i32, i32) {
    %c0_i32 = arith.constant 0 : i32
    %c0_i32_0 = arith.constant 0 : i32
    %c0_i32_1 = arith.constant 0 : i32
    return %c0_i32, %c0_i32_0 : i32, i32
  }
  func.func @transform_5(%arg0: i32) -> (i32, i32) {
    %c0_i32 = arith.constant 0 : i32
    %c0_i32_0 = arith.constant 0 : i32
    return %arg0, %c0_i32 : i32, i32
  }
}

</mosaic_0001>

<llo_original>
// kernel: net_forward.1
$region0: #{net_forward.1}
  #allocation0 [shape = 'u32[]', space=smem, size = 0x4, offset = 0x4, fixed_abs, tag = 'smem constant byte address 0x4 - core index']
  #allocation1 [shape = 'u32[72,128]{1,0:T(1,128)}', space=vmem, size = 0x9000, scoped, tag = 'internal scratch']
  %s0 = inlined_call_operand.hbm [shape: f32[8,64], index: 0, kind: input, shape index: {}]
  %s1 = inlined_call_operand.hbm [shape: f32[64,128], index: 1, kind: input, shape index: {}]
  %s2 = inlined_call_operand.vmem [shape: f32[1,128], index: 2, kind: input, shape index: {}]
  %s3 = inlined_call_operand.hbm [shape: f32[128,128], index: 3, kind: input, shape index: {}]
  %s4 = inlined_call_operand.vmem [shape: f32[1,4], index: 4, kind: input, shape index: {}]
  %s5 = inlined_call_operand.vmem [shape: f32[8,4], index: 5, kind: output, shape index: {}]
  %s6 = sld [smem:[#allocation0]]
  $region42: #{net_forward.1} parent=0
    _
  %s8 = ssub.s32 1, %s6
  %s9 = scalar_select 0, %s8, %s6
  $region1: #{net_forward.1} parent=0
    #allocation2 [shape = 'u8[4096]{0}', space=vmem, size = 0x1000, scoped, tag = 'input window, operand 0, single buffered']
    #allocation3 [shape = 's32[1]{0}', space=sflag, size = 0x4, scoped, tag = 'scoped memory for net_forward.1']
    #allocation4 [shape = 'u8[32768]{0}', space=vmem, size = 0x8000, scoped, tag = 'input window, operand 1, single buffered']
    #allocation5 [shape = 's32[1]{0}', space=sflag, size = 0x4, scoped, tag = 'scoped memory for net_forward.1']
    #allocation6 [shape = 'u8[65536]{0}', space=vmem, size = 0x10000, scoped, tag = 'input window, operand 3, single buffered']
    %10 = vsyncpa [#allocation3], 0
    %11 = vsyncpa [#allocation5], 0
    // Predicated region
    $region2: #{net_forward.1} parent=1 // pred_check
      _
    $region3: #{net_forward.1} parent=1 // pred_check_branch
      %13 = sbr.rel (0) target = $region5
    $region4: #{net_forward.1} parent=1 // pred_region
      %15 = vsyncadd [#allocation3], 0
      %s17 = sshll.u32 %s0, 4
      %s18 = int_to_ptr.hbm [resolvable:$true] %s17
      %s19 = sshll.u32 [#allocation2], 4
      %s20 = int_to_ptr.vmem [resolvable:$true] %s19
      %22 = dma.hbm_to_vmem [thread:$0]  %s18, 128, %s20, [#allocation3]
    $region5: #{net_forward.1} parent=1 // pred_fallthru
      _
    // Predicated region
    $region6: #{net_forward.1} parent=1 // pred_check
      _
    $region7: #{net_forward.1} parent=1 // pred_check_branch
      %24 = sbr.rel (0) target = $region9
    $region8: #{net_forward.1} parent=1 // pred_region
      %26 = vsyncadd [#allocation5], 0
      %s27 = sshll.u32 %s1, 4
      %s28 = int_to_ptr.hbm [resolvable:$true] %s27
      %s29 = sshll.u32 [#allocation4], 4
      %s30 = int_to_ptr.vmem [resolvable:$true] %s29
      %35 = dma.hbm_to_vmem [thread:$0]  %s28, 1024, %s30, [#allocation5], 128, 128, 8
    $region9: #{net_forward.1} parent=1 // pred_fallthru
      _
    // Predicated region
    $region10: #{net_forward.1} parent=1 // pred_check
      _
    $region11: #{net_forward.1} parent=1 // pred_check_branch
      %37 = sbr.rel (0) target = $region13
    $region12: #{net_forward.1} parent=1 // pred_region
      _
    $region13: #{net_forward.1} parent=1 // pred_fallthru
      _
    // Predicated region
    $region14: #{net_forward.1} parent=1 // pred_check
      _
    $region15: #{net_forward.1} parent=1 // pred_check_branch
      %39 = sbr.rel (0) target = $region17
    $region16: #{net_forward.1} parent=1 // pred_region
      %41 = vsyncadd [#allocation5], 0
      %s42 = sshll.u32 %s3, 4
      %s43 = int_to_ptr.hbm [resolvable:$true] %s42
      %s44 = sshll.u32 [#allocation6], 4
      %s45 = int_to_ptr.vmem [resolvable:$true] %s44
      %50 = dma.hbm_to_vmem [thread:$0]  %s43, 2048, %s45, [#allocation5], 128, 128, 8
    $region17: #{net_forward.1} parent=1 // pred_fallthru
      _
    // Predicated region
    $region18: #{net_forward.1} parent=1 // pred_check
      _
    $region19: #{net_forward.1} parent=1 // pred_check_branch
      %52 = sbr.rel (0) target = $region21
    $region20: #{net_forward.1} parent=1 // pred_region
      _
    $region21: #{net_forward.1} parent=1 // pred_fallthru
      _
    // Predicated region
    $region22: #{net_forward.1} parent=1 // pred_check
      _
    $region23: #{net_forward.1} parent=1 // pred_check_branch
      %54 = sbr.rel (0) target = $region25
    $region24: #{net_forward.1} parent=1 // pred_region
      %56 = dma.done [#allocation3], 128
    $region25: #{net_forward.1} parent=1 // pred_fallthru
      _
    // Predicated region
    $region26: #{net_forward.1} parent=1 // pred_check
      _
    $region27: #{net_forward.1} parent=1 // pred_check_branch
      %58 = sbr.rel (0) target = $region29
    $region28: #{net_forward.1} parent=1 // pred_region
      %60 = dma.done [#allocation5], 1024
    $region29: #{net_forward.1} parent=1 // pred_fallthru
      _
    // Predicated region
    $region30: #{net_forward.1} parent=1 // pred_check
      _
    $region31: #{net_forward.1} parent=1 // pred_check_branch
      %62 = sbr.rel (0) target = $region33
    $region32: #{net_forward.1} parent=1 // pred_region
      %64 = dma.done [#allocation5], 2048
    $region33: #{net_forward.1} parent=1 // pred_fallthru
      _
    %v65 = vld [vmem:[#allocation2] sm:$0xff]
    %v66 = vld [vmem:[#allocation4] sm:$0xff]
    %v67 = vld [vmem:[#allocation4 + $0x8] sm:$0xff]
    %v68 = vld [vmem:[#allocation4 + $0x10] sm:$0xff]
    %v69 = vld [vmem:[#allocation4 + $0x18] sm:$0xff]
    %v70 = vld [vmem:[#allocation4 + $0x20] sm:$0xff]
    %v71 = vld [vmem:[#allocation4 + $0x28] sm:$0xff]
    %v72 = vld [vmem:[#allocation4 + $0x30] sm:$0xff]
    %v73 = vld [vmem:[#allocation4 + $0x38] sm:$0xff]
    %v74 = vld [vmem:[%s2] sm:$0x1]
    %v76 = vperm.slane %v74, 0
    %vm78 = vcmask 523264
    %v80 = vsel %vm78, %v65, 0
    %82 = vmatpush.msra.mxu0 0.0
    %83 = vmatpush.msra.mxu0 0.0
    %84 = vmatpush.msra.mxu0 0.0
    %85 = vmatpush.msra.mxu0 0.0
    %86 = vmatpush.msra.mxu0 0.0
    %87 = vmatpush.msra.mxu0 0.0
    %88 = vmatpush.msra.mxu0 0.0
    %89 = vmatpush.msra.mxu0 0.0
    %90 = vmatpush.msra.mxu0 %v73
    %91 = vmatpush.msra.mxu0 %v72
    %92 = vmatpush.msra.mxu0 %v71
    %93 = vmatpush.msra.mxu0 %v70
    %94 = vmatpush.msra.mxu0 %v69
    %95 = vmatpush.msra.mxu0 %v68
    %96 = vmatpush.msra.mxu0 %v67
    %97 = vmatpush.msra.mxu0 %v66
    %98 = vmatmul.f32.gmra.mxu0 %v80
    %v99 = vpop.f32.mrf.mxu0
    %v100 = vadd.f32 %v76, %v99
    %101 = vdwg.mxu0
    %v102 = vmax.f32 %v100, 0.0
    %v103 = vld [vmem:[#allocation6] sm:$0xff]
    %v104 = vld [vmem:[#allocation6 + $0x8] sm:$0xff]
    %v105 = vld [vmem:[#allocation6 + $0x10] sm:$0xff]
    %v106 = vld [vmem:[#allocation6 + $0x18] sm:$0xff]
    %v107 = vld [vmem:[#allocation6 + $0x20] sm:$0xff]
    %v108 = vld [vmem:[#allocation6 + $0x28] sm:$0xff]
    %v109 = vld [vmem:[#allocation6 + $0x30] sm:$0xff]
    %v110 = vld [vmem:[#allocation6 + $0x38] sm:$0xff]
    %v111 = vld [vmem:[#allocation6 + $0x40] sm:$0xff]
    %v112 = vld [vmem:[#allocation6 + $0x48] sm:$0xff]
    %v113 = vld [vmem:[#allocation6 + $0x50] sm:$0xff]
    %v114 = vld [vmem:[#allocation6 + $0x58] sm:$0xff]
    %v115 = vld [vmem:[#allocation6 + $0x60] sm:$0xff]
    %v116 = vld [vmem:[#allocation6 + $0x68] sm:$0xff]
    %v117 = vld [vmem:[#allocation6 + $0x70] sm:$0xff]
    %v118 = vld [vmem:[#allocation6 + $0x78] sm:$0xff]
    %119 = vmatpush.msra.mxu0 %v118
    %120 = vmatpush.msra.mxu0 %v117
    %121 = vmatpush.msra.mxu0 %v116
    %122 = vmatpush.msra.mxu0 %v115
    %123 = vmatpush.msra.mxu0 %v114
    %124 = vmatpush.msra.mxu0 %v113
    %125 = vmatpush.msra.mxu0 %v112
    %126 = vmatpush.msra.mxu0 %v111
    %127 = vmatpush.msra.mxu0 %v110
    %128 = vmatpush.msra.mxu0 %v109
    %129 = vmatpush.msra.mxu0 %v108
    %130 = vmatpush.msra.mxu0 %v107
    %131 = vmatpush.msra.mxu0 %v106
    %132 = vmatpush.msra.mxu0 %v105
    %133 = vmatpush.msra.mxu0 %v104
    %134 = vmatpush.msra.mxu0 %v103
    %135 = vmatmul.f32.gmra.mxu0 %v102
    %v136 = vpop.f32.mrf.mxu0
    %v137 = vadd.f32 0.0, %v136
    %138 = vdwg.mxu0
    %v139 = vld [vmem:[%s4] sm:$0x1]
    %v141 = vperm.slane %v139, 0
    %v143 = vadd.f32 %v137, %v141
    %vm144 = vcmask 31744
    %145 = vst.msk [vmem:[%s5] sm:$0xff] %vm144, %v143
    // Predicated region
    $region34: #{net_forward.1} parent=1 // pred_check
      _
    $region35: #{net_forward.1} parent=1 // pred_check_branch
      %147 = sbr.rel (0) target = $region37
    $region36: #{net_forward.1} parent=1 // pred_region
      _
    $region37: #{net_forward.1} parent=1 // pred_fallthru
      _
    // Predicated region
    $region38: #{net_forward.1} parent=1 // pred_check
      _
    $region39: #{net_forward.1} parent=1 // pred_check_branch
      %149 = sbr.rel (0) target = $region41
    $region40: #{net_forward.1} parent=1 // pred_region
      _
    $region41: #{net_forward.1} parent=1 // pred_fallthru
      _
    %150 = vsyncpa [#allocation3], 1
    %151 = vsyncpa [#allocation5], 1

</llo_original>
